<compile_context>
chip_gen: v7x
topology: tpu7x:2x2x1
jax: 0.10.0
libtpu: 0.0.40
codegen_flags: <defaults>
</compile_context>

<pallas_src>
import functools

import jax
import jax.numpy as jnp
from jax import lax
from jax.experimental import pallas as pl
from jax.experimental.pallas import tpu as pltpu

_VMEM_LIMIT = 32 * 1024 * 1024  # safe on v5e/v6e/v7x (v7x scoped default is 32 MiB)


# ------------------------------ Pallas kernel -------------------------------

def _vision_fused_kernel(x_ref, wrow_ref, bconv_ref, sfc_ref, bfc_ref, wpt_ref,
                         o_ref, *, TB, H, Kp):
    """TB images per grid step: conv3x3 + ReLU -> GAP+FC -> L2 -> proj -> L2."""
    xb = x_ref[...].astype(jnp.bfloat16)                       # (TB, H+2, Kp), one cast
    # Merged 3-band banded-Toeplitz conv: LHS row (b*H + h) holds padded rows
    # h, h+1, h+2 of image b stacked along K -> one (TB*H, 3*Kp) @ (3*Kp, W*c_mid).
    pieces = [xb[:, dh:dh + H, :].reshape(TB * H, Kp) for dh in range(3)]
    lhs = jnp.concatenate(pieces, axis=-1)                      # (TB*H, 3*Kp)
    acc = jnp.dot(lhs, wrow_ref[...],
                  preferred_element_type=jnp.float32)           # (TB*H, W*c_mid)
    acc = jnp.maximum(acc + bconv_ref[...], 0.0)                # conv bias + ReLU
    # GAP + FC folded into one lane-dense matmul (s_fc already holds 1/(H*W)).
    t = jnp.dot(acc.astype(jnp.bfloat16), sfc_ref[...],
                preferred_element_type=jnp.float32)             # (TB*H, vision_dim)
    embed = jnp.sum(t.reshape(TB, H, t.shape[-1]), axis=1) + bfc_ref[...]  # (TB, vision_dim)
    # Projection head: L2-norm -> Linear(no bias) -> L2-norm.
    xn = embed * lax.rsqrt(jnp.sum(embed * embed, axis=-1, keepdims=True) + 1e-12)
    y = jnp.dot(xn.astype(jnp.bfloat16), wpt_ref[...],
                preferred_element_type=jnp.float32)             # (TB, proj_dim)
    o_ref[...] = y * lax.rsqrt(jnp.sum(y * y, axis=-1, keepdims=True) + 1e-12)


# -------------------------------- parameters --------------------------------

def _banded_conv_weight(w_conv, width, k_pad):
    """(3,3,C,c_mid) conv weight -> merged banded matrix (3*k_pad, width*c_mid)."""
    kh, kw, c_in, c_mid = w_conv.shape
    eye_w = jnp.eye(width, dtype=jnp.float32)
    bands = []
    for dh in range(kh):
        m = jnp.zeros(((width + kw - 1) * c_in, width * c_mid), jnp.float32)
        for dw in range(kw):
            blk = jnp.kron(eye_w, w_conv[dh, dw])               # (W*C, W*c_mid), block-diag
            m = m + jnp.pad(blk, ((dw * c_in, (kw - 1 - dw) * c_in), (0, 0)))
        bands.append(jnp.pad(m, ((0, k_pad - m.shape[0]), (0, 0))))  # K -> 128-aligned
    return jnp.concatenate(bands, axis=0).astype(jnp.bfloat16)      # (3*k_pad, W*c_mid)


def init_params(key, c_in=4, c_mid=32, vision_dim=128, proj_dim=128,
                height=16, width=16):
    k1, k2, k3, k4, k5 = jax.random.split(key, 5)
    k_pad = max(128, -(-((width + 2) * c_in) // 128) * 128)
    w_conv = jax.random.normal(k1, (3, 3, c_in, c_mid), jnp.float32) / jnp.sqrt(9.0 * c_in)
    b_conv = jax.random.normal(k2, (c_mid,), jnp.float32) * 0.01
    w_fc = jax.random.normal(k3, (c_mid, vision_dim), jnp.float32) / jnp.sqrt(1.0 * c_mid)
    b_fc = jax.random.normal(k4, (1, vision_dim), jnp.float32) * 0.01
    # torch.nn.Linear(vision_dim, proj_dim, bias=False) stores (proj_dim, vision_dim);
    # pre-transpose once here so the hot path never transposes it.
    w_proj = jax.random.normal(k5, (proj_dim, vision_dim), jnp.float32) / jnp.sqrt(1.0 * vision_dim)
    # GAP and FC are both linear: fold them (and the 1/(H*W) scale) into one matrix.
    s_fc = jnp.tile(w_fc, (width, 1)) / float(height * width)       # (W*c_mid, vision_dim)
    return dict(
        w_row=_banded_conv_weight(w_conv, width, k_pad),            # (3*k_pad, W*c_mid) bf16
        b_flat=jnp.tile(b_conv.reshape(1, c_mid), (1, width)),      # (1, W*c_mid) f32
        s_fc=s_fc.astype(jnp.bfloat16),                             # (W*c_mid, vision_dim)
        b_fc=b_fc,                                                  # (1, vision_dim) f32
        w_proj_t=jnp.transpose(w_proj).astype(jnp.bfloat16),        # (vision_dim, proj_dim)
    )


# ------------------------------- forward pass --------------------------------

@jax.jit
def vision_model_forward(pixel_values, params):
    """pixel_values: (B, C, H, W) float32 (PyTorch NCHW). Returns (B, proj_dim)."""
    B, C, H, W = pixel_values.shape
    Wc = params["b_flat"].shape[1]                  # W * c_mid
    vision_dim = params["b_fc"].shape[1]
    proj_dim = params["w_proj_t"].shape[1]
    Hp, WpC = H + 2, (W + 2) * C
    Kp = params["w_row"].shape[0] // 3              # 128-aligned K per conv band

    # Batch tile: stack TB images along the matmul M dim (M = TB*H).
    if B <= 16:
        TB = B
    else:
        TB = 16 if B % 16 == 0 else 8
    B_pad = -(-B // TB) * TB

    # NCHW -> NHWC, zero-pad (1,1) spatially, flatten (W+2, C) into one row slab,
    # zero-pad the lane dim to Kp and the batch to a TB multiple.
    # TODO(synk): at real image sizes fold this layout step into the kernel via DMA.
    x = jnp.transpose(pixel_values, (0, 2, 3, 1)).astype(jnp.float32)
    xflat = jnp.pad(x, ((0, 0), (1, 1), (1, 1), (0, 0))).reshape(B, Hp, WpC)
    xflat = jnp.pad(xflat, ((0, B_pad - B), (0, 0), (0, Kp - WpC)))

    out = pl.pallas_call(
        functools.partial(_vision_fused_kernel, TB=TB, H=H, Kp=Kp),
        out_shape=jax.ShapeDtypeStruct((B_pad, proj_dim), jnp.float32),
        grid=(B_pad // TB,),
        in_specs=[
            pl.BlockSpec((TB, Hp, Kp), lambda b: (b, 0, 0)),
            pl.BlockSpec((3 * Kp, Wc), lambda b: (0, 0)),
            pl.BlockSpec((1, Wc), lambda b: (0, 0)),
            pl.BlockSpec((Wc, vision_dim), lambda b: (0, 0)),
            pl.BlockSpec((1, vision_dim), lambda b: (0, 0)),
            pl.BlockSpec((vision_dim, proj_dim), lambda b: (0, 0)),
        ],
        out_specs=pl.BlockSpec((TB, proj_dim), lambda b: (b, 0)),
        compiler_params=pltpu.CompilerParams(
            dimension_semantics=("parallel",),
            vmem_limit_bytes=_VMEM_LIMIT),
    )(xflat, params["w_row"], params["b_flat"], params["s_fc"],
      params["b_fc"], params["w_proj_t"])
    return out[:B]


if __name__ == "__main__":
    B, C, H, W = 2, 4, 16, 16
    params = init_params(jax.random.PRNGKey(42), c_in=C, c_mid=32,
                         vision_dim=128, proj_dim=128, height=H, width=W)
    pixel_values = jax.random.normal(jax.random.PRNGKey(0), (B, C, H, W), jnp.float32)

    out = jax.block_until_ready(vision_model_forward(pixel_values, params))

    assert out.shape == (B, 128), out.shape
    # output of the projection head must be L2-normalized per row
    norms = jnp.linalg.norm(out, axis=-1)
    assert bool(jnp.allclose(norms, 1.0, atol=1e-4)), norms
    print("KERNEL_OK")
</pallas_src>

<mosaic_0001>
module attributes {stable_mosaic.version = 11 : i64} {
  func.func @_vision_fused_kernel(%arg0: i32, %arg1: memref<2x18x128xf32, #tpu.memory_space<vmem>>, %arg2: memref<384x512xbf16, #tpu.memory_space<vmem>>, %arg3: memref<1x512xf32, #tpu.memory_space<vmem>>, %arg4: memref<512x128xbf16, #tpu.memory_space<vmem>>, %arg5: memref<1x128xf32, #tpu.memory_space<vmem>>, %arg6: memref<128x128xbf16, #tpu.memory_space<vmem>>, %arg7: memref<2x128xf32, #tpu.memory_space<vmem>>) attributes {dimension_semantics = [#tpu.dimension_semantics<parallel>], iteration_bounds = array<i64: 1>, scalar_prefetch = 0 : i64, scratch_operands = 0 : i64, tpu.core_type = #tpu.core_type<tc>, window_params = [{transform_indices = @transform_0, window_bounds = array<i64: 2, 18, 128>}, {pipeline_mode = #tpu.pipeline_mode<synchronous>, transform_indices = @transform_1, window_bounds = array<i64: 384, 512>}, {pipeline_mode = #tpu.pipeline_mode<synchronous>, transform_indices = @transform_2, window_bounds = array<i64: 1, 512>}, {pipeline_mode = #tpu.pipeline_mode<synchronous>, transform_indices = @transform_3, window_bounds = array<i64: 512, 128>}, {pipeline_mode = #tpu.pipeline_mode<synchronous>, transform_indices = @transform_4, window_bounds = array<i64: 1, 128>}, {pipeline_mode = #tpu.pipeline_mode<synchronous>, transform_indices = @transform_5, window_bounds = array<i64: 128, 128>}, {transform_indices = @transform_6, window_bounds = array<i64: 2, 128>}]} {
    %c0 = arith.constant 0 : index
    %c0_0 = arith.constant 0 : index
    %c0_1 = arith.constant 0 : index
    %0 = vector.load %arg1[%c0, %c0_0, %c0_1] : memref<2x18x128xf32, #tpu.memory_space<vmem>>, vector<2x18x128xf32>
    %1 = arith.truncf %0 : vector<2x18x128xf32> to vector<2x18x128xbf16>
    %2 = vector.extract_strided_slice %1 {offsets = [0, 0, 0], sizes = [2, 16, 128], strides = [1, 1, 1]} : vector<2x18x128xbf16> to vector<2x16x128xbf16>
    %3 = vector.shape_cast %2 : vector<2x16x128xbf16> to vector<32x128xbf16>
    %4 = vector.extract_strided_slice %1 {offsets = [0, 1, 0], sizes = [2, 16, 128], strides = [1, 1, 1]} : vector<2x18x128xbf16> to vector<2x16x128xbf16>
    %5 = vector.shape_cast %4 : vector<2x16x128xbf16> to vector<32x128xbf16>
    %6 = vector.extract_strided_slice %1 {offsets = [0, 2, 0], sizes = [2, 16, 128], strides = [1, 1, 1]} : vector<2x18x128xbf16> to vector<2x16x128xbf16>
    %7 = vector.shape_cast %6 : vector<2x16x128xbf16> to vector<32x128xbf16>
    %8 = tpu.concatenate %3, %5, %7 in 1 : vector<32x128xbf16>, vector<32x128xbf16>, vector<32x128xbf16> -> vector<32x384xbf16>
    %c0_2 = arith.constant 0 : index
    %c0_3 = arith.constant 0 : index
    %9 = vector.load %arg2[%c0_2, %c0_3] : memref<384x512xbf16, #tpu.memory_space<vmem>>, vector<384x512xbf16>
    %cst = arith.constant dense<0.000000e+00> : vector<32x512xf32>
    %10 = tpu.matmul %8, %9, %cst {dimension_numbers = #tpu.dot_dimension_numbers<[1], [0], [0], [1], [0, 0, 1, 1], [], []>} : vector<32x384xbf16>, vector<384x512xbf16>, vector<32x512xf32> -> vector<32x512xf32>
    %c0_4 = arith.constant 0 : index
    %c0_5 = arith.constant 0 : index
    %11 = vector.load %arg3[%c0_4, %c0_5] : memref<1x512xf32, #tpu.memory_space<vmem>>, vector<1x512xf32>
    %12 = vector.broadcast %11 : vector<1x512xf32> to vector<32x512xf32>
    %13 = arith.addf %10, %12 : vector<32x512xf32>
    %cst_6 = arith.constant 0.000000e+00 : f32
    %14 = vector.broadcast %cst_6 : f32 to vector<32x512xf32>
    %15 = arith.maximumf %13, %14 : vector<32x512xf32>
    %16 = arith.truncf %15 : vector<32x512xf32> to vector<32x512xbf16>
    %c0_7 = arith.constant 0 : index
    %c0_8 = arith.constant 0 : index
    %17 = vector.load %arg4[%c0_7, %c0_8] : memref<512x128xbf16, #tpu.memory_space<vmem>>, vector<512x128xbf16>
    %cst_9 = arith.constant dense<0.000000e+00> : vector<32x128xf32>
    %18 = tpu.matmul %16, %17, %cst_9 {dimension_numbers = #tpu.dot_dimension_numbers<[1], [0], [0], [1], [0, 0, 1, 1], [], []>} : vector<32x512xbf16>, vector<512x128xbf16>, vector<32x128xf32> -> vector<32x128xf32>
    %19 = vector.shape_cast %18 : vector<32x128xf32> to vector<2x16x128xf32>
    %cst_10 = arith.constant dense<0.000000e+00> : vector<2x128xf32>
    %20 = vector.multi_reduction <add>, %19, %cst_10 [1] : vector<2x16x128xf32> to vector<2x128xf32>
    %c0_11 = arith.constant 0 : index
    %c0_12 = arith.constant 0 : index
    %21 = vector.load %arg5[%c0_11, %c0_12] : memref<1x128xf32, #tpu.memory_space<vmem>>, vector<1x128xf32>
    %22 = vector.broadcast %21 : vector<1x128xf32> to vector<2x128xf32>
    %23 = arith.addf %20, %22 : vector<2x128xf32>
    %24 = arith.mulf %23, %23 : vector<2x128xf32>
    %cst_13 = arith.constant dense<0.000000e+00> : vector<2xf32>
    %25 = vector.multi_reduction <add>, %24, %cst_13 [1] : vector<2x128xf32> to vector<2xf32>
    %26 = vector.shape_cast %25 : vector<2xf32> to vector<2x1xf32>
    %cst_14 = arith.constant 9.99999996E-13 : f32
    %27 = vector.broadcast %cst_14 : f32 to vector<2x1xf32>
    %28 = arith.addf %26, %27 : vector<2x1xf32>
    %29 = math.rsqrt %28 : vector<2x1xf32>
    %30 = vector.broadcast %29 : vector<2x1xf32> to vector<2x128xf32>
    %31 = arith.mulf %23, %30 : vector<2x128xf32>
    %32 = arith.truncf %31 : vector<2x128xf32> to vector<2x128xbf16>
    %c0_15 = arith.constant 0 : index
    %c0_16 = arith.constant 0 : index
    %33 = vector.load %arg6[%c0_15, %c0_16] : memref<128x128xbf16, #tpu.memory_space<vmem>>, vector<128x128xbf16>
    %cst_17 = arith.constant dense<0.000000e+00> : vector<2x128xf32>
    %34 = tpu.matmul %32, %33, %cst_17 {dimension_numbers = #tpu.dot_dimension_numbers<[1], [0], [0], [1], [0, 0, 1, 1], [], []>} : vector<2x128xbf16>, vector<128x128xbf16>, vector<2x128xf32> -> vector<2x128xf32>
    %35 = arith.mulf %34, %34 : vector<2x128xf32>
    %cst_18 = arith.constant dense<0.000000e+00> : vector<2xf32>
    %36 = vector.multi_reduction <add>, %35, %cst_18 [1] : vector<2x128xf32> to vector<2xf32>
    %37 = vector.shape_cast %36 : vector<2xf32> to vector<2x1xf32>
    %cst_19 = arith.constant 9.99999996E-13 : f32
    %38 = vector.broadcast %cst_19 : f32 to vector<2x1xf32>
    %39 = arith.addf %37, %38 : vector<2x1xf32>
    %40 = math.rsqrt %39 : vector<2x1xf32>
    %41 = vector.broadcast %40 : vector<2x1xf32> to vector<2x128xf32>
    %42 = arith.mulf %34, %41 : vector<2x128xf32>
    %c0_20 = arith.constant 0 : index
    %c0_21 = arith.constant 0 : index
    %43 = vector.load %arg7[%c0_20, %c0_21] : memref<2x128xf32, #tpu.memory_space<vmem>>, vector<2x128xf32>
    tpu.vector_store %arg7[%c0_20, %c0_21], %42 {strides = array<i32>} : memref<2x128xf32, #tpu.memory_space<vmem>>, vector<2x128xf32>,
    return
  }
  func.func @transform_0(%arg0: i32) -> (i32, i32, i32) {
    %c0_i32 = arith.constant 0 : i32
    %c0_i32_0 = arith.constant 0 : i32
    %c0_i32_1 = arith.constant 0 : i32
    return %arg0, %c0_i32, %c0_i32_0 : i32, i32, i32
  }
  func.func @transform_1(%arg0: i32) -> (i32, i32) {
    %c0_i32 = arith.constant 0 : i32
    %c0_i32_0 = arith.constant 0 : i32
    %c0_i32_1 = arith.constant 0 : i32
    return %c0_i32, %c0_i32_0 : i32, i32
  }
  func.func @transform_2(%arg0: i32) -> (i32, i32) {
    %c0_i32 = arith.constant 0 : i32
    %c0_i32_0 = arith.constant 0 : i32
    %c0_i32_1 = arith.constant 0 : i32
    return %c0_i32, %c0_i32_0 : i32, i32
  }
  func.func @transform_3(%arg0: i32) -> (i32, i32) {
    %c0_i32 = arith.constant 0 : i32
    %c0_i32_0 = arith.constant 0 : i32
    %c0_i32_1 = arith.constant 0 : i32
    return %c0_i32, %c0_i32_0 : i32, i32
  }
  func.func @transform_4(%arg0: i32) -> (i32, i32) {
    %c0_i32 = arith.constant 0 : i32
    %c0_i32_0 = arith.constant 0 : i32
    %c0_i32_1 = arith.constant 0 : i32
    return %c0_i32, %c0_i32_0 : i32, i32
  }
  func.func @transform_5(%arg0: i32) -> (i32, i32) {
    %c0_i32 = arith.constant 0 : i32
    %c0_i32_0 = arith.constant 0 : i32
    %c0_i32_1 = arith.constant 0 : i32
    return %c0_i32, %c0_i32_0 : i32, i32
  }
  func.func @transform_6(%arg0: i32) -> (i32, i32) {
    %c0_i32 = arith.constant 0 : i32
    %c0_i32_0 = arith.constant 0 : i32
    return %arg0, %c0_i32 : i32, i32
  }
}

</mosaic_0001>

<llo_original>
// kernel: vision_model_forward.1
$region0: #{vision_model_forward.1}
  #allocation0 [shape = 'u32[]', space=smem, size = 0x4, offset = 0x4, fixed_abs, tag = 'smem constant byte address 0x4 - core index']
  #allocation1 [shape = 'u32[144,128]{1,0:T(1,128)}', space=vmem, size = 0x12000, scoped, tag = 'internal scratch']
  %s0 = inlined_call_operand.vmem [shape: f32[2,18,128], index: 0, kind: input, shape index: {}]
  %s1 = inlined_call_operand.vmem [shape: bf16[384,512], index: 1, kind: input, shape index: {}]
  %s2 = inlined_call_operand.vmem [shape: f32[1,512], index: 2, kind: input, shape index: {}]
  %s3 = inlined_call_operand.hbm [shape: bf16[512,128], index: 3, kind: input, shape index: {}]
  %s4 = inlined_call_operand.vmem [shape: f32[1,128], index: 4, kind: input, shape index: {}]
  %s5 = inlined_call_operand.vmem [shape: bf16[128,128], index: 5, kind: input, shape index: {}]
  %s6 = inlined_call_operand.hbm [shape: f32[2,128], index: 6, kind: output, shape index: {}]
  %s7 = sld [smem:[#allocation0]]
  $region38: #{vision_model_forward.1} parent=0
    _
  %s9 = ssub.s32 1, %s7
  %s10 = scalar_select 0, %s9, %s7
  $region1: #{vision_model_forward.1} parent=0
    #allocation2 [shape = 'u8[131072]{0}', space=vmem, size = 0x20000, scoped, tag = 'input window, operand 3, single buffered']
    #allocation3 [shape = 's32[1]{0}', space=sflag, size = 0x4, scoped, tag = 'scoped memory for vision_model_forward.1']
    #allocation4 [shape = 's32[1]{0}', space=sflag, size = 0x4, scoped, tag = 'scoped memory for vision_model_forward.1']
    #allocation5 [shape = 'u8[1024]{0}', space=vmem, size = 0x400, scoped, tag = 'output window, operand 0, single buffered']
    %11 = vsyncpa [#allocation3], 0
    %12 = vsyncpa [#allocation4], 0
    // Predicated region
    $region2: #{vision_model_forward.1} parent=1 // pred_check
      _
    $region3: #{vision_model_forward.1} parent=1 // pred_check_branch
      %14 = sbr.rel (0) target = $region5
    $region4: #{vision_model_forward.1} parent=1 // pred_region
      _
    $region5: #{vision_model_forward.1} parent=1 // pred_fallthru
      _
    // Predicated region
    $region6: #{vision_model_forward.1} parent=1 // pred_check
      _
    $region7: #{vision_model_forward.1} parent=1 // pred_check_branch
      %16 = sbr.rel (0) target = $region9
    $region8: #{vision_model_forward.1} parent=1 // pred_region
      _
    $region9: #{vision_model_forward.1} parent=1 // pred_fallthru
      _
    // Predicated region
    $region10: #{vision_model_forward.1} parent=1 // pred_check
      _
    $region11: #{vision_model_forward.1} parent=1 // pred_check_branch
      %18 = sbr.rel (0) target = $region13
    $region12: #{vision_model_forward.1} parent=1 // pred_region
      _
    $region13: #{vision_model_forward.1} parent=1 // pred_fallthru
      _
    // Predicated region
    $region14: #{vision_model_forward.1} parent=1 // pred_check
      _
    $region15: #{vision_model_forward.1} parent=1 // pred_check_branch
      %20 = sbr.rel (0) target = $region17
    $region16: #{vision_model_forward.1} parent=1 // pred_region
      %s22 = ssub.s32 4096, 4096
      %23 = vsyncadd [#allocation3], %s22
      %s24 = sshll.u32 [#allocation2], 4
      %s25 = int_to_ptr.vmem [resolvable:$true] %s24
      %30 = dma.hbm_to_vmem [thread:$0]  %s3, 4096, %s25, [#allocation3], 64, 64, 4
    $region17: #{vision_model_forward.1} parent=1 // pred_fallthru
      _
    // Predicated region
    $region18: #{vision_model_forward.1} parent=1 // pred_check
      _
    $region19: #{vision_model_forward.1} parent=1 // pred_check_branch
      %32 = sbr.rel (0) target = $region21
    $region20: #{vision_model_forward.1} parent=1 // pred_region
      _
    $region21: #{vision_model_forward.1} parent=1 // pred_fallthru
      _
    // Predicated region
    $region22: #{vision_model_forward.1} parent=1 // pred_check
      _
    $region23: #{vision_model_forward.1} parent=1 // pred_check_branch
      %34 = sbr.rel (0) target = $region25
    $region24: #{vision_model_forward.1} parent=1 // pred_region
      _
    $region25: #{vision_model_forward.1} parent=1 // pred_fallthru
      _
    // Predicated region
    $region26: #{vision_model_forward.1} parent=1 // pred_check
      _
    $region27: #{vision_model_forward.1} parent=1 // pred_check_branch
      %36 = sbr.rel (0) target = $region29
    $region28: #{vision_model_forward.1} parent=1 // pred_region
      %37 = dma.done [#allocation3], 4096
    $region29: #{vision_model_forward.1} parent=1 // pred_fallthru
      _
    %v39 = vld [vmem:[%s0] sm:$0xff]
    %v40 = vld [vmem:[%s0 + $0x8] sm:$0xff]
    %v41 = vld [vmem:[%s0 + $0x10] sm:$0x3]
    %v42 = vld [vmem:[%s0 + $0x18] sm:$0xff]
    %v43 = vld [vmem:[%s0 + $0x20] sm:$0xff]
    %v44 = vld [vmem:[%s0 + $0x28] sm:$0x3]
    %v45 = vpack.c.bf16 %v40, %v39
    %v46 = vpack.c.bf16 %v41, %v41
    %v47 = vpack.c.bf16 %v43, %v42
    %v48 = vpack.c.bf16 %v44, %v44
    %vm49 = vsmask.f32 7424
    %v51 = vshrl.u32 %v45, 16
    %v53 = vshll.u32 %v45, 16
    %v55 = vrot.slane %v53, 1
    %v56 = vor.u32 %v51, %v55
    %v58 = vshll.u32 %v46, 16
    %v60 = vrot.slane %v58, 1
    %v61 = vsel %vm49, %v56, %v60
    %v63 = vshrl.u32 %v47, 16
    %v65 = vshll.u32 %v47, 16
    %v67 = vrot.slane %v65, 1
    %v68 = vor.u32 %v63, %v67
    %v70 = vshll.u32 %v48, 16
    %v72 = vrot.slane %v70, 1
    %v73 = vsel %vm49, %v68, %v72
    %vm80 = vcmask 1046528
    %v81 = vrot.slane %v45, 1
    %v82 = vrot.slane %v46, 1
    %v83 = vsel %vm80, %v81, %v82
    %v84 = vrot.slane %v47, 1
    %v85 = vrot.slane %v48, 1
    %v86 = vsel %vm80, %v84, %v85
    %v89 = vld [vmem:[%s1] sm:$0xff]
    %v90 = vld [vmem:[%s1 + $0x8] sm:$0xff]
    %v91 = vld [vmem:[%s1 + $0x10] sm:$0xff]
    %v92 = vld [vmem:[%s1 + $0x18] sm:$0xff]
    %v93 = vld [vmem:[%s1 + $0x20] sm:$0xff]
    %v94 = vld [vmem:[%s1 + $0x28] sm:$0xff]
    %v95 = vld [vmem:[%s1 + $0x30] sm:$0xff]
    %v96 = vld [vmem:[%s1 + $0x38] sm:$0xff]
    %v97 = vld [vmem:[%s1 + $0x40] sm:$0xff]
    %v98 = vld [vmem:[%s1 + $0x48] sm:$0xff]
    %v99 = vld [vmem:[%s1 + $0x50] sm:$0xff]
    %v100 = vld [vmem:[%s1 + $0x58] sm:$0xff]
    %v101 = vld [vmem:[%s1 + $0x60] sm:$0xff]
    %v102 = vld [vmem:[%s1 + $0x68] sm:$0xff]
    %v103 = vld [vmem:[%s1 + $0x70] sm:$0xff]
    %v104 = vld [vmem:[%s1 + $0x78] sm:$0xff]
    %v105 = vld [vmem:[%s1 + $0x80] sm:$0xff]
    %v106 = vld [vmem:[%s1 + $0x88] sm:$0xff]
    %v107 = vld [vmem:[%s1 + $0x90] sm:$0xff]
    %v108 = vld [vmem:[%s1 + $0x98] sm:$0xff]
    %v109 = vld [vmem:[%s1 + $0xa0] sm:$0xff]
    %v110 = vld [vmem:[%s1 + $0xa8] sm:$0xff]
    %v111 = vld [vmem:[%s1 + $0xb0] sm:$0xff]
    %v112 = vld [vmem:[%s1 + $0xb8] sm:$0xff]
    %v113 = vld [vmem:[%s1 + $0xc0] sm:$0xff]
    %v114 = vld [vmem:[%s1 + $0xc8] sm:$0xff]
    %v115 = vld [vmem:[%s1 + $0xd0] sm:$0xff]
    %v116 = vld [vmem:[%s1 + $0xd8] sm:$0xff]
    %v117 = vld [vmem:[%s1 + $0xe0] sm:$0xff]
    %v118 = vld [vmem:[%s1 + $0xe8] sm:$0xff]
    %v119 = vld [vmem:[%s1 + $0xf0] sm:$0xff]
    %v120 = vld [vmem:[%s1 + $0xf8] sm:$0xff]
    %v121 = vld [vmem:[%s1 + $0x100] sm:$0xff]
    %v122 = vld [vmem:[%s1 + $0x108] sm:$0xff]
    %v123 = vld [vmem:[%s1 + $0x110] sm:$0xff]
    %v124 = vld [vmem:[%s1 + $0x118] sm:$0xff]
    %v125 = vld [vmem:[%s1 + $0x120] sm:$0xff]
    %v126 = vld [vmem:[%s1 + $0x128] sm:$0xff]
    %v127 = vld [vmem:[%s1 + $0x130] sm:$0xff]
    %v128 = vld [vmem:[%s1 + $0x138] sm:$0xff]
    %v129 = vld [vmem:[%s1 + $0x140] sm:$0xff]
    %v130 = vld [vmem:[%s1 + $0x148] sm:$0xff]
    %v131 = vld [vmem:[%s1 + $0x150] sm:$0xff]
    %v132 = vld [vmem:[%s1 + $0x158] sm:$0xff]
    %v133 = vld [vmem:[%s1 + $0x160] sm:$0xff]
    %v134 = vld [vmem:[%s1 + $0x168] sm:$0xff]
    %v135 = vld [vmem:[%s1 + $0x170] sm:$0xff]
    %v136 = vld [vmem:[%s1 + $0x178] sm:$0xff]
    %v137 = vld [vmem:[%s1 + $0x180] sm:$0xff]
    %v138 = vld [vmem:[%s1 + $0x188] sm:$0xff]
    %v139 = vld [vmem:[%s1 + $0x190] sm:$0xff]
    %v140 = vld [vmem:[%s1 + $0x198] sm:$0xff]
    %v141 = vld [vmem:[%s1 + $0x1a0] sm:$0xff]
    %v142 = vld [vmem:[%s1 + $0x1a8] sm:$0xff]
    %v143 = vld [vmem:[%s1 + $0x1b0] sm:$0xff]
    %v144 = vld [vmem:[%s1 + $0x1b8] sm:$0xff]
    %v145 = vld [vmem:[%s1 + $0x1c0] sm:$0xff]
    %v146 = vld [vmem:[%s1 + $0x1c8] sm:$0xff]
    %v147 = vld [vmem:[%s1 + $0x1d0] sm:$0xff]
    %v148 = vld [vmem:[%s1 + $0x1d8] sm:$0xff]
    %v149 = vld [vmem:[%s1 + $0x1e0] sm:$0xff]
    %v150 = vld [vmem:[%s1 + $0x1e8] sm:$0xff]
    %v151 = vld [vmem:[%s1 + $0x1f0] sm:$0xff]
    %v152 = vld [vmem:[%s1 + $0x1f8] sm:$0xff]
    %v153 = vld [vmem:[%s1 + $0x200] sm:$0xff]
    %v154 = vld [vmem:[%s1 + $0x208] sm:$0xff]
    %v155 = vld [vmem:[%s1 + $0x210] sm:$0xff]
    %v156 = vld [vmem:[%s1 + $0x218] sm:$0xff]
    %v157 = vld [vmem:[%s1 + $0x220] sm:$0xff]
    %v158 = vld [vmem:[%s1 + $0x228] sm:$0xff]
    %v159 = vld [vmem:[%s1 + $0x230] sm:$0xff]
    %v160 = vld [vmem:[%s1 + $0x238] sm:$0xff]
    %v161 = vld [vmem:[%s1 + $0x240] sm:$0xff]
    %v162 = vld [vmem:[%s1 + $0x248] sm:$0xff]
    %v163 = vld [vmem:[%s1 + $0x250] sm:$0xff]
    %v164 = vld [vmem:[%s1 + $0x258] sm:$0xff]
    %v165 = vld [vmem:[%s1 + $0x260] sm:$0xff]
    %v166 = vld [vmem:[%s1 + $0x268] sm:$0xff]
    %v167 = vld [vmem:[%s1 + $0x270] sm:$0xff]
    %v168 = vld [vmem:[%s1 + $0x278] sm:$0xff]
    %v169 = vld [vmem:[%s1 + $0x280] sm:$0xff]
    %v170 = vld [vmem:[%s1 + $0x288] sm:$0xff]
    %v171 = vld [vmem:[%s1 + $0x290] sm:$0xff]
    %v172 = vld [vmem:[%s1 + $0x298] sm:$0xff]
    %v173 = vld [vmem:[%s1 + $0x2a0] sm:$0xff]
    %v174 = vld [vmem:[%s1 + $0x2a8] sm:$0xff]
    %v175 = vld [vmem:[%s1 + $0x2b0] sm:$0xff]
    %v176 = vld [vmem:[%s1 + $0x2b8] sm:$0xff]
    %v177 = vld [vmem:[%s1 + $0x2c0] sm:$0xff]
    %v178 = vld [vmem:[%s1 + $0x2c8] sm:$0xff]
    %v179 = vld [vmem:[%s1 + $0x2d0] sm:$0xff]
    %v180 = vld [vmem:[%s1 + $0x2d8] sm:$0xff]
    %v181 = vld [vmem:[%s1 + $0x2e0] sm:$0xff]
    %v182 = vld [vmem:[%s1 + $0x2e8] sm:$0xff]
    %v183 = vld [vmem:[%s1 + $0x2f0] sm:$0xff]
    %v184 = vld [vmem:[%s1 + $0x2f8] sm:$0xff]
    %v185 = vld [vmem:[%s2] sm:$0xf]
    %v187 = vlaneseq
    %v188 = vshrl.u32 %v187, 7
    %v189 = vsub.s32 0, %v188
    %v190 = vrot.slane %v185, %v189
    %v191 = vlaneseq
    %v192 = vshrl.u32 %v191, 7
    %v193 = vsub.s32 1, %v192
    %v194 = vrot.slane %v185, %v193
    %v195 = vlaneseq
    %v196 = vshrl.u32 %v195, 7
    %v197 = vsub.s32 2, %v196
    %v198 = vrot.slane %v185, %v197
    %v199 = vlaneseq
    %v200 = vshrl.u32 %v199, 7
    %v201 = vsub.s32 3, %v200
    %v202 = vrot.slane %v185, %v201
    %v303 = vunpack.c.l.b16 %v89
    %v304 = vunpack.c.h.b16 %v89
    %v305 = vunpack.c.l.b16 %v90
    %v306 = vunpack.c.h.b16 %v90
    %v307 = vunpack.c.l.b16 %v91
    %v308 = vunpack.c.h.b16 %v91
    %v309 = vunpack.c.l.b16 %v92
    %v310 = vunpack.c.h.b16 %v92
    %v311 = vunpack.c.l.b16 %v93
    %v312 = vunpack.c.h.b16 %v93
    %v313 = vunpack.c.l.b16 %v94
    %v314 = vunpack.c.h.b16 %v94
    %v315 = vunpack.c.l.b16 %v95
    %v316 = vunpack.c.h.b16 %v95
    %v317 = vunpack.c.l.b16 %v96
    %v318 = vunpack.c.h.b16 %v96
    %v319 = vunpack.c.l.b16 %v97
    %v320 = vunpack.c.h.b16 %v97
    %v321 = vunpack.c.l.b16 %v98
    %v322 = vunpack.c.h.b16 %v98
    %v323 = vunpack.c.l.b16 %v99
    %v324 = vunpack.c.h.b16 %v99
    %v325 = vunpack.c.l.b16 %v100
    %v326 = vunpack.c.h.b16 %v100
    %v327 = vunpack.c.l.b16 %v101
    %v328 = vunpack.c.h.b16 %v101
    %v329 = vunpack.c.l.b16 %v102
    %v330 = vunpack.c.h.b16 %v102
    %v331 = vunpack.c.l.b16 %v103
    %v332 = vunpack.c.h.b16 %v103
    %v333 = vunpack.c.l.b16 %v104
    %v334 = vunpack.c.h.b16 %v104
    %v335 = vunpack.c.l.b16 %v105
    %v336 = vunpack.c.h.b16 %v105
    %v337 = vunpack.c.l.b16 %v106
    %v338 = vunpack.c.h.b16 %v106
    %v339 = vunpack.c.l.b16 %v107
    %v340 = vunpack.c.h.b16 %v107
    %v341 = vunpack.c.l.b16 %v108
    %v342 = vunpack.c.h.b16 %v108
    %v343 = vunpack.c.l.b16 %v109
    %v344 = vunpack.c.h.b16 %v109
    %v345 = vunpack.c.l.b16 %v110
    %v346 = vunpack.c.h.b16 %v110
    %v347 = vunpack.c.l.b16 %v111
    %v348 = vunpack.c.h.b16 %v111
    %v349 = vunpack.c.l.b16 %v112
    %v350 = vunpack.c.h.b16 %v112
    %v351 = vunpack.c.l.b16 %v113
    %v352 = vunpack.c.h.b16 %v113
    %v353 = vunpack.c.l.b16 %v114
    %v354 = vunpack.c.h.b16 %v114
    %v355 = vunpack.c.l.b16 %v115
    %v356 = vunpack.c.h.b16 %v115
    %v357 = vunpack.c.l.b16 %v116
    %v358 = vunpack.c.h.b16 %v116
    %v359 = vunpack.c.l.b16 %v117
    %v360 = vunpack.c.h.b16 %v117
    %v361 = vunpack.c.l.b16 %v118
    %v362 = vunpack.c.h.b16 %v118
    %v363 = vunpack.c.l.b16 %v119
    %v364 = vunpack.c.h.b16 %v119
    %v365 = vunpack.c.l.b16 %v120
    %v366 = vunpack.c.h.b16 %v120
    %v367 = vunpack.c.l.b16 %v121
    %v368 = vunpack.c.h.b16 %v121
    %v369 = vunpack.c.l.b16 %v122
    %v370 = vunpack.c.h.b16 %v122
    %v371 = vunpack.c.l.b16 %v123
    %v372 = vunpack.c.h.b16 %v123
    %v373 = vunpack.c.l.b16 %v124
    %v374 = vunpack.c.h.b16 %v124
    %v375 = vunpack.c.l.b16 %v125
    %v376 = vunpack.c.h.b16 %v125
    %v377 = vunpack.c.l.b16 %v126
    %v378 = vunpack.c.h.b16 %v126
    %v379 = vunpack.c.l.b16 %v127
    %v380 = vunpack.c.h.b16 %v127
    %v381 = vunpack.c.l.b16 %v128
    %v382 = vunpack.c.h.b16 %v128
    %v383 = vunpack.c.l.b16 %v129
    %v384 = vunpack.c.h.b16 %v129
    %v385 = vunpack.c.l.b16 %v130
    %v386 = vunpack.c.h.b16 %v130
    %v387 = vunpack.c.l.b16 %v131
    %v388 = vunpack.c.h.b16 %v131
    %v389 = vunpack.c.l.b16 %v132
    %v390 = vunpack.c.h.b16 %v132
    %v391 = vunpack.c.l.b16 %v133
    %v392 = vunpack.c.h.b16 %v133
    %v393 = vunpack.c.l.b16 %v134
    %v394 = vunpack.c.h.b16 %v134
    %v395 = vunpack.c.l.b16 %v135
    %v396 = vunpack.c.h.b16 %v135
    %v397 = vunpack.c.l.b16 %v136
    %v398 = vunpack.c.h.b16 %v136
    %v399 = vunpack.c.l.b16 %v137
    %v400 = vunpack.c.h.b16 %v137
    %v401 = vunpack.c.l.b16 %v138
    %v402 = vunpack.c.h.b16 %v138
    %v403 = vunpack.c.l.b16 %v139
    %v404 = vunpack.c.h.b16 %v139
    %v405 = vunpack.c.l.b16 %v140
    %v406 = vunpack.c.h.b16 %v140
    %v407 = vunpack.c.l.b16 %v141
    %v408 = vunpack.c.h.b16 %v141
    %v409 = vunpack.c.l.b16 %v142
    %v410 = vunpack.c.h.b16 %v142
    %v411 = vunpack.c.l.b16 %v143
    %v412 = vunpack.c.h.b16 %v143
    %v413 = vunpack.c.l.b16 %v144
    %v414 = vunpack.c.h.b16 %v144
    %v415 = vunpack.c.l.b16 %v145
    %v416 = vunpack.c.h.b16 %v145
    %v417 = vunpack.c.l.b16 %v146
    %v418 = vunpack.c.h.b16 %v146
    %v419 = vunpack.c.l.b16 %v147
    %v420 = vunpack.c.h.b16 %v147
    %v421 = vunpack.c.l.b16 %v148
    %v422 = vunpack.c.h.b16 %v148
    %v423 = vunpack.c.l.b16 %v149
    %v424 = vunpack.c.h.b16 %v149
    %v425 = vunpack.c.l.b16 %v150
    %v426 = vunpack.c.h.b16 %v150
    %v427 = vunpack.c.l.b16 %v151
    %v428 = vunpack.c.h.b16 %v151
    %v429 = vunpack.c.l.b16 %v152
    %v430 = vunpack.c.h.b16 %v152
    %v431 = vunpack.c.l.b16 %v153
    %v432 = vunpack.c.h.b16 %v153
    %v433 = vunpack.c.l.b16 %v154
    %v434 = vunpack.c.h.b16 %v154
    %v435 = vunpack.c.l.b16 %v155
    %v436 = vunpack.c.h.b16 %v155
    %v437 = vunpack.c.l.b16 %v156
    %v438 = vunpack.c.h.b16 %v156
    %v439 = vunpack.c.l.b16 %v157
    %v440 = vunpack.c.h.b16 %v157
    %v441 = vunpack.c.l.b16 %v158
    %v442 = vunpack.c.h.b16 %v158
    %v443 = vunpack.c.l.b16 %v159
    %v444 = vunpack.c.h.b16 %v159
    %v445 = vunpack.c.l.b16 %v160
    %v446 = vunpack.c.h.b16 %v160
    %v447 = vunpack.c.l.b16 %v161
    %v448 = vunpack.c.h.b16 %v161
    %v449 = vunpack.c.l.b16 %v162
    %v450 = vunpack.c.h.b16 %v162
    %v451 = vunpack.c.l.b16 %v163
    %v452 = vunpack.c.h.b16 %v163
    %v453 = vunpack.c.l.b16 %v164
    %v454 = vunpack.c.h.b16 %v164
    %v455 = vunpack.c.l.b16 %v165
    %v456 = vunpack.c.h.b16 %v165
    %v457 = vunpack.c.l.b16 %v166
    %v458 = vunpack.c.h.b16 %v166
    %v459 = vunpack.c.l.b16 %v167
    %v460 = vunpack.c.h.b16 %v167
    %v461 = vunpack.c.l.b16 %v168
    %v462 = vunpack.c.h.b16 %v168
    %v463 = vunpack.c.l.b16 %v169
    %v464 = vunpack.c.h.b16 %v169
    %v465 = vunpack.c.l.b16 %v170
    %v466 = vunpack.c.h.b16 %v170
    %v467 = vunpack.c.l.b16 %v171
    %v468 = vunpack.c.h.b16 %v171
    %v469 = vunpack.c.l.b16 %v172
    %v470 = vunpack.c.h.b16 %v172
    %v471 = vunpack.c.l.b16 %v173
    %v472 = vunpack.c.h.b16 %v173
    %v473 = vunpack.c.l.b16 %v174
    %v474 = vunpack.c.h.b16 %v174
    %v475 = vunpack.c.l.b16 %v175
    %v476 = vunpack.c.h.b16 %v175
    %v477 = vunpack.c.l.b16 %v176
    %v478 = vunpack.c.h.b16 %v176
    %v479 = vunpack.c.l.b16 %v177
    %v480 = vunpack.c.h.b16 %v177
    %v481 = vunpack.c.l.b16 %v178
    %v482 = vunpack.c.h.b16 %v178
    %v483 = vunpack.c.l.b16 %v179
    %v484 = vunpack.c.h.b16 %v179
    %v485 = vunpack.c.l.b16 %v180
    %v486 = vunpack.c.h.b16 %v180
    %v487 = vunpack.c.l.b16 %v181
    %v488 = vunpack.c.h.b16 %v181
    %v489 = vunpack.c.l.b16 %v182
    %v490 = vunpack.c.h.b16 %v182
    %v491 = vunpack.c.l.b16 %v183
    %v492 = vunpack.c.h.b16 %v183
    %v493 = vunpack.c.l.b16 %v184
    %v494 = vunpack.c.h.b16 %v184
    %v495 = vpack.c.b16 %v307, %v303
    %v496 = vpack.c.b16 %v308, %v304
    %v497 = vpack.c.b16 %v309, %v305
    %v498 = vpack.c.b16 %v310, %v306
    %v499 = vpack.c.b16 %v315, %v311
    %v500 = vpack.c.b16 %v316, %v312
    %v501 = vpack.c.b16 %v317, %v313
    %v502 = vpack.c.b16 %v318, %v314
    %v503 = vpack.c.b16 %v323, %v319
    %v504 = vpack.c.b16 %v324, %v320
    %v505 = vpack.c.b16 %v325, %v321
    %v506 = vpack.c.b16 %v326, %v322
    %v507 = vpack.c.b16 %v331, %v327
    %v508 = vpack.c.b16 %v332, %v328
    %v509 = vpack.c.b16 %v333, %v329
    %v510 = vpack.c.b16 %v334, %v330
    %v511 = vpack.c.b16 %v339, %v335
    %v512 = vpack.c.b16 %v340, %v336
    %v513 = vpack.c.b16 %v341, %v337
    %v514 = vpack.c.b16 %v342, %v338
    %v515 = vpack.c.b16 %v347, %v343
    %v516 = vpack.c.b16 %v348, %v344
    %v517 = vpack.c.b16 %v349, %v345
    %v518 = vpack.c.b16 %v350, %v346
    %v519 = vpack.c.b16 %v355, %v351
    %v520 = vpack.c.b16 %v356, %v352
    %v521 = vpack.c.b16 %v357, %v353
    %v522 = vpack.c.b16 %v358, %v354
    %v523 = vpack.c.b16 %v363, %v359
    %v524 = vpack.c.b16 %v364, %v360
    %v525 = vpack.c.b16 %v365, %v361
    %v526 = vpack.c.b16 %v366, %v362
    %v527 = vpack.c.b16 %v371, %v367
    %v528 = vpack.c.b16 %v372, %v368
    %v529 = vpack.c.b16 %v373, %v369
    %v530 = vpack.c.b16 %v374, %v370
    %v531 = vpack.c.b16 %v379, %v375
    %v532 = vpack.c.b16 %v380, %v376
    %v533 = vpack.c.b16 %v381, %v377
    %v534 = vpack.c.b16 %v382, %v378
    %v535 = vpack.c.b16 %v387, %v383
    %v536 = vpack.c.b16 %v388, %v384
    %v537 = vpack.c.b16 %v389, %v385
    %v538 = vpack.c.b16 %v390, %v386
    %v539 = vpack.c.b16 %v395, %v391
    %v540 = vpack.c.b16 %v396, %v392
    %v541 = vpack.c.b16 %v397, %v393
    %v542 = vpack.c.b16 %v398, %v394
    %v543 = vpack.c.b16 %v403, %v399
    %v544 = vpack.c.b16 %v404, %v400
    %v545 = vpack.c.b16 %v405, %v401
    %v546 = vpack.c.b16 %v406, %v402
    %v547 = vpack.c.b16 %v411, %v407
    %v548 = vpack.c.b16 %v412, %v408
    %v549 = vpack.c.b16 %v413, %v409
    %v550 = vpack.c.b16 %v414, %v410
    %v551 = vpack.c.b16 %v419, %v415
    %v552 = vpack.c.b16 %v420, %v416
    %v553 = vpack.c.b16 %v421, %v417
    %v554 = vpack.c.b16 %v422, %v418
    %v555 = vpack.c.b16 %v427, %v423
    %v556 = vpack.c.b16 %v428, %v424
    %v557 = vpack.c.b16 %v429, %v425
    %v558 = vpack.c.b16 %v430, %v426
    %v559 = vpack.c.b16 %v435, %v431
    %v560 = vpack.c.b16 %v436, %v432
    %v561 = vpack.c.b16 %v437, %v433
    %v562 = vpack.c.b16 %v438, %v434
    %v563 = vpack.c.b16 %v443, %v439
    %v564 = vpack.c.b16 %v444, %v440
    %v565 = vpack.c.b16 %v445, %v441
    %v566 = vpack.c.b16 %v446, %v442
    %v567 = vpack.c.b16 %v451, %v447
    %v568 = vpack.c.b16 %v452, %v448
    %v569 = vpack.c.b16 %v453, %v449
    %v570 = vpack.c.b16 %v454, %v450
    %v571 = vpack.c.b16 %v459, %v455
    %v572 = vpack.c.b16 %v460, %v456
    %v573 = vpack.c.b16 %v461, %v457
    %v574 = vpack.c.b16 %v462, %v458
    %v575 = vpack.c.b16 %v467, %v463
    %v576 = vpack.c.b16 %v468, %v464
    %v577 = vpack.c.b16 %v469, %v465
    %v578 = vpack.c.b16 %v470, %v466
    %v579 = vpack.c.b16 %v475, %v471
    %v580 = vpack.c.b16 %v476, %v472
    %v581 = vpack.c.b16 %v477, %v473
    %v582 = vpack.c.b16 %v478, %v474
    %v583 = vpack.c.b16 %v483, %v479
    %v584 = vpack.c.b16 %v484, %v480
    %v585 = vpack.c.b16 %v485, %v481
    %v586 = vpack.c.b16 %v486, %v482
    %v587 = vpack.c.b16 %v491, %v487
    %v588 = vpack.c.b16 %v492, %v488
    %v589 = vpack.c.b16 %v493, %v489
    %v590 = vpack.c.b16 %v494, %v490
    %687 = vmatprep.subr.bf16.mxu0 %v496
    %688 = vmatpush1.bf16.msra.mxu0 %v495
    %689 = vmatprep.subr.bf16.mxu0 %v500
    %690 = vmatpush1.bf16.msra.mxu0 %v499
    %691 = vmatprep.subr.bf16.mxu0 %v504
    %692 = vmatpush1.bf16.msra.mxu0 %v503
    %693 = vmatprep.subr.bf16.mxu0 %v508
    %694 = vmatpush1.bf16.msra.mxu0 %v507
    %695 = vmatprep.subr.bf16.mxu0 %v512
    %696 = vmatpush1.bf16.msra.mxu0 %v511
    %697 = vmatprep.subr.bf16.mxu0 %v516
    %698 = vmatpush1.bf16.msra.mxu0 %v515
    %699 = vmatprep.subr.bf16.mxu0 %v520
    %700 = vmatpush1.bf16.msra.mxu0 %v519
    %701 = vmatprep.subr.bf16.mxu0 %v524
    %702 = vmatpush1.bf16.msra.mxu0 %v523
    %703 = vmatprep.subr.bf16.mxu0 %v528
    %704 = vmatpush1.bf16.msra.mxu0 %v527
    %705 = vmatprep.subr.bf16.mxu0 %v532
    %706 = vmatpush1.bf16.msra.mxu0 %v531
    %707 = vmatprep.subr.bf16.mxu0 %v536
    %708 = vmatpush1.bf16.msra.mxu0 %v535
    %709 = vmatprep.subr.bf16.mxu0 %v540
    %710 = vmatpush1.bf16.msra.mxu0 %v539
    %711 = vmatprep.subr.bf16.mxu0 %v544
    %712 = vmatpush1.bf16.msra.mxu0 %v543
    %713 = vmatprep.subr.bf16.mxu0 %v548
    %714 = vmatpush1.bf16.msra.mxu0 %v547
    %715 = vmatprep.subr.bf16.mxu0 %v552
    %716 = vmatpush1.bf16.msra.mxu0 %v551
    %717 = vmatprep.subr.bf16.mxu0 %v556
    %718 = vmatpush1.bf16.msra.mxu0 %v555
    %719 = vmatprep.mubr.bf16.mxu0 %v61
    %720 = vmatmul.mubr.bf16.gmra.mrb[0].mxu0 %v45
    %v721 = vpop.f32.mrb[0].mxu0
    %v722 = vadd.f32 %v190, %v721
    %v723 = vpop.f32.mrb[0].mxu0
    %v724 = vadd.f32 %v194, %v723
    %v725 = vpop.f32.mrb[0].mxu0
    %v726 = vadd.f32 %v190, %v725
    %v727 = vpop.f32.mrb[0].mxu0
    %v728 = vadd.f32 %v194, %v727
    %729 = vmatprep.mubr.bf16.mxu0 %v73
    %730 = vmatmul.mubr.bf16.gmra.mrb[0].mxu0 %v47
    %v731 = vpop.f32.mrb[0].mxu0
    %v732 = vadd.f32 %v190, %v731
    %v733 = vpop.f32.mrb[0].mxu0
    %v734 = vadd.f32 %v194, %v733
    %v735 = vpop.f32.mrb[0].mxu0
    %v736 = vadd.f32 %v190, %v735
    %v737 = vpop.f32.mrb[0].mxu0
    %v738 = vadd.f32 %v194, %v737
    %739 = vdwg.mxu0
    %740 = vmatprep.subr.bf16.mxu0 %v560
    %741 = vmatpush1.bf16.msra.mxu0 %v559
    %742 = vmatprep.subr.bf16.mxu0 %v564
    %743 = vmatpush1.bf16.msra.mxu0 %v563
    %744 = vmatprep.subr.bf16.mxu0 %v568
    %745 = vmatpush1.bf16.msra.mxu0 %v567
    %746 = vmatprep.subr.bf16.mxu0 %v572
    %747 = vmatpush1.bf16.msra.mxu0 %v571
    %748 = vmatprep.subr.bf16.mxu0 %v576
    %749 = vmatpush1.bf16.msra.mxu0 %v575
    %750 = vmatprep.subr.bf16.mxu0 %v580
    %751 = vmatpush1.bf16.msra.mxu0 %v579
    %752 = vmatprep.subr.bf16.mxu0 %v584
    %753 = vmatpush1.bf16.msra.mxu0 %v583
    %754 = vmatprep.subr.bf16.mxu0 %v588
    %755 = vmatpush1.bf16.msra.mxu0 %v587
    %756 = vmatprep.subr.bf16.mxu0 0
    %757 = vmatpush1.bf16.msra.mxu0 0
    %758 = vmatprep.subr.bf16.mxu0 0
    %759 = vmatpush1.bf16.msra.mxu0 0
    %760 = vmatprep.subr.bf16.mxu0 0
    %761 = vmatpush1.bf16.msra.mxu0 0
    %762 = vmatprep.subr.bf16.mxu0 0
    %763 = vmatpush1.bf16.msra.mxu0 0
    %764 = vmatprep.subr.bf16.mxu0 0
    %765 = vmatpush1.bf16.msra.mxu0 0
    %766 = vmatprep.subr.bf16.mxu0 0
    %767 = vmatpush1.bf16.msra.mxu0 0
    %768 = vmatprep.subr.bf16.mxu0 0
    %769 = vmatpush1.bf16.msra.mxu0 0
    %770 = vmatprep.subr.bf16.mxu0 0
    %771 = vmatpush1.bf16.msra.mxu0 0
    %772 = vmatprep.mubr.bf16.mxu0 0
    %773 = vmatmul.mubr.bf16.gmra.mrb[0].mxu0 %v83
    %v774 = vpop.f32.mrb[0].mxu0
    %v775 = vadd.f32 %v722, %v774
    %v776 = vpop.f32.mrb[0].mxu0
    %v777 = vadd.f32 %v724, %v776
    %v778 = vpop.f32.mrb[0].mxu0
    %v779 = vadd.f32 %v726, %v778
    %v780 = vpop.f32.mrb[0].mxu0
    %v781 = vadd.f32 %v728, %v780
    %782 = vmatprep.mubr.bf16.mxu0 0
    %783 = vmatmul.mubr.bf16.gmra.mrb[0].mxu0 %v86
    %v784 = vpop.f32.mrb[0].mxu0
    %v785 = vadd.f32 %v732, %v784
    %v786 = vpop.f32.mrb[0].mxu0
    %v787 = vadd.f32 %v734, %v786
    %v788 = vpop.f32.mrb[0].mxu0
    %v789 = vadd.f32 %v736, %v788
    %v790 = vpop.f32.mrb[0].mxu0
    %v791 = vadd.f32 %v738, %v790
    %792 = vdwg.mxu0
    %793 = vmatprep.subr.bf16.mxu0 %v498
    %794 = vmatpush1.bf16.msra.mxu0 %v497
    %795 = vmatprep.subr.bf16.mxu0 %v502
    %796 = vmatpush1.bf16.msra.mxu0 %v501
    %797 = vmatprep.subr.bf16.mxu0 %v506
    %798 = vmatpush1.bf16.msra.mxu0 %v505
    %799 = vmatprep.subr.bf16.mxu0 %v510
    %800 = vmatpush1.bf16.msra.mxu0 %v509
    %801 = vmatprep.subr.bf16.mxu0 %v514
    %802 = vmatpush1.bf16.msra.mxu0 %v513
    %803 = vmatprep.subr.bf16.mxu0 %v518
    %804 = vmatpush1.bf16.msra.mxu0 %v517
    %805 = vmatprep.subr.bf16.mxu0 %v522
    %806 = vmatpush1.bf16.msra.mxu0 %v521
    %807 = vmatprep.subr.bf16.mxu0 %v526
    %808 = vmatpush1.bf16.msra.mxu0 %v525
    %809 = vmatprep.subr.bf16.mxu0 %v530
    %810 = vmatpush1.bf16.msra.mxu0 %v529
    %811 = vmatprep.subr.bf16.mxu0 %v534
    %812 = vmatpush1.bf16.msra.mxu0 %v533
    %813 = vmatprep.subr.bf16.mxu0 %v538
    %814 = vmatpush1.bf16.msra.mxu0 %v537
    %815 = vmatprep.subr.bf16.mxu0 %v542
    %816 = vmatpush1.bf16.msra.mxu0 %v541
    %817 = vmatprep.subr.bf16.mxu0 %v546
    %818 = vmatpush1.bf16.msra.mxu0 %v545
    %819 = vmatprep.subr.bf16.mxu0 %v550
    %820 = vmatpush1.bf16.msra.mxu0 %v549
    %821 = vmatprep.subr.bf16.mxu0 %v554
    %822 = vmatpush1.bf16.msra.mxu0 %v553
    %823 = vmatprep.subr.bf16.mxu0 %v558
    %824 = vmatpush1.bf16.msra.mxu0 %v557
    %825 = vmatprep.mubr.bf16.mxu0 %v61
    %826 = vmatmul.mubr.bf16.gmra.mrb[0].mxu0 %v45
    %v827 = vpop.f32.mrb[0].mxu0
    %v828 = vadd.f32 %v198, %v827
    %v829 = vpop.f32.mrb[0].mxu0
    %v830 = vadd.f32 %v202, %v829
    %v831 = vpop.f32.mrb[0].mxu0
    %v832 = vadd.f32 %v198, %v831
    %v833 = vpop.f32.mrb[0].mxu0
    %v834 = vadd.f32 %v202, %v833
    %835 = vmatprep.mubr.bf16.mxu0 %v73
    %836 = vmatmul.mubr.bf16.gmra.mrb[0].mxu0 %v47
    %v837 = vpop.f32.mrb[0].mxu0
    %v838 = vadd.f32 %v198, %v837
    %v839 = vpop.f32.mrb[0].mxu0
    %v840 = vadd.f32 %v202, %v839
    %v841 = vpop.f32.mrb[0].mxu0
    %v842 = vadd.f32 %v198, %v841
    %v843 = vpop.f32.mrb[0].mxu0
    %v844 = vadd.f32 %v202, %v843
    %845 = vdwg.mxu0
    %846 = vmatprep.subr.bf16.mxu0 %v562
    %847 = vmatpush1.bf16.msra.mxu0 %v561
    %848 = vmatprep.subr.bf16.mxu0 %v566
    %849 = vmatpush1.bf16.msra.mxu0 %v565
    %850 = vmatprep.subr.bf16.mxu0 %v570
    %851 = vmatpush1.bf16.msra.mxu0 %v569
    %852 = vmatprep.subr.bf16.mxu0 %v574
    %853 = vmatpush1.bf16.msra.mxu0 %v573
    %854 = vmatprep.subr.bf16.mxu0 %v578
    %855 = vmatpush1.bf16.msra.mxu0 %v577
    %856 = vmatprep.subr.bf16.mxu0 %v582
    %857 = vmatpush1.bf16.msra.mxu0 %v581
    %858 = vmatprep.subr.bf16.mxu0 %v586
    %859 = vmatpush1.bf16.msra.mxu0 %v585
    %860 = vmatprep.subr.bf16.mxu0 %v590
    %861 = vmatpush1.bf16.msra.mxu0 %v589
    %862 = vmatprep.subr.bf16.mxu0 0
    %863 = vmatpush1.bf16.msra.mxu0 0
    %864 = vmatprep.subr.bf16.mxu0 0
    %865 = vmatpush1.bf16.msra.mxu0 0
    %866 = vmatprep.subr.bf16.mxu0 0
    %867 = vmatpush1.bf16.msra.mxu0 0
    %868 = vmatprep.subr.bf16.mxu0 0
    %869 = vmatpush1.bf16.msra.mxu0 0
    %870 = vmatprep.subr.bf16.mxu0 0
    %871 = vmatpush1.bf16.msra.mxu0 0
    %872 = vmatprep.subr.bf16.mxu0 0
    %873 = vmatpush1.bf16.msra.mxu0 0
    %874 = vmatprep.subr.bf16.mxu0 0
    %875 = vmatpush1.bf16.msra.mxu0 0
    %876 = vmatprep.subr.bf16.mxu0 0
    %877 = vmatpush1.bf16.msra.mxu0 0
    %878 = vmatprep.mubr.bf16.mxu0 0
    %879 = vmatmul.mubr.bf16.gmra.mrb[0].mxu0 %v83
    %v880 = vpop.f32.mrb[0].mxu0
    %v881 = vadd.f32 %v828, %v880
    %v882 = vpop.f32.mrb[0].mxu0
    %v883 = vadd.f32 %v830, %v882
    %v884 = vpop.f32.mrb[0].mxu0
    %v885 = vadd.f32 %v832, %v884
    %v886 = vpop.f32.mrb[0].mxu0
    %v887 = vadd.f32 %v834, %v886
    %888 = vmatprep.mubr.bf16.mxu0 0
    %889 = vmatmul.mubr.bf16.gmra.mrb[0].mxu0 %v86
    %v890 = vpop.f32.mrb[0].mxu0
    %v891 = vadd.f32 %v838, %v890
    %v892 = vpop.f32.mrb[0].mxu0
    %v893 = vadd.f32 %v840, %v892
    %v894 = vpop.f32.mrb[0].mxu0
    %v895 = vadd.f32 %v842, %v894
    %v896 = vpop.f32.mrb[0].mxu0
    %v897 = vadd.f32 %v844, %v896
    %898 = vdwg.mxu0
    %v899 = vmax.f32 %v775, 0.0
    %v900 = vmax.f32 %v777, 0.0
    %v901 = vmax.f32 %v881, 0.0
    %v902 = vmax.f32 %v883, 0.0
    %v903 = vmax.f32 %v779, 0.0
    %v904 = vmax.f32 %v781, 0.0
    %v905 = vmax.f32 %v885, 0.0
    %v906 = vmax.f32 %v887, 0.0
    %v907 = vmax.f32 %v785, 0.0
    %v908 = vmax.f32 %v787, 0.0
    %v909 = vmax.f32 %v891, 0.0
    %v910 = vmax.f32 %v893, 0.0
    %v911 = vmax.f32 %v789, 0.0
    %v912 = vmax.f32 %v791, 0.0
    %v913 = vmax.f32 %v895, 0.0
    %v914 = vmax.f32 %v897, 0.0
    %v915 = vpack.c.bf16 %v903, %v899
    %v916 = vpack.c.bf16 %v904, %v900
    %v917 = vpack.c.bf16 %v905, %v901
    %v918 = vpack.c.bf16 %v906, %v902
    %v919 = vpack.c.bf16 %v911, %v907
    %v920 = vpack.c.bf16 %v912, %v908
    %v921 = vpack.c.bf16 %v913, %v909
    %v922 = vpack.c.bf16 %v914, %v910
    %v923 = vld [vmem:[#allocation2] sm:$0xf]
    %v924 = vld [vmem:[#allocation2 + $0x4] sm:$0xf]
    %v925 = vld [vmem:[#allocation2 + $0x8] sm:$0xf]
    %v926 = vld [vmem:[#allocation2 + $0xc] sm:$0xf]
    %v927 = vld [vmem:[#allocation2 + $0x10] sm:$0xf]
    %v928 = vld [vmem:[#allocation2 + $0x14] sm:$0xf]
    %v929 = vld [vmem:[#allocation2 + $0x18] sm:$0xf]
    %v930 = vld [vmem:[#allocation2 + $0x1c] sm:$0xf]
    %v931 = vld [vmem:[#allocation2 + $0x20] sm:$0xf]
    %v932 = vld [vmem:[#allocation2 + $0x24] sm:$0xf]
    %v933 = vld [vmem:[#allocation2 + $0x28] sm:$0xf]
    %v934 = vld [vmem:[#allocation2 + $0x2c] sm:$0xf]
    %v935 = vld [vmem:[#allocation2 + $0x30] sm:$0xf]
    %v936 = vld [vmem:[#allocation2 + $0x34] sm:$0xf]
    %v937 = vld [vmem:[#allocation2 + $0x38] sm:$0xf]
    %v938 = vld [vmem:[#allocation2 + $0x3c] sm:$0xf]
    %v939 = vld [vmem:[#allocation2 + $0x40] sm:$0xf]
    %v940 = vld [vmem:[#allocation2 + $0x44] sm:$0xf]
    %v941 = vld [vmem:[#allocation2 + $0x48] sm:$0xf]
    %v942 = vld [vmem:[#allocation2 + $0x4c] sm:$0xf]
    %v943 = vld [vmem:[#allocation2 + $0x50] sm:$0xf]
    %v944 = vld [vmem:[#allocation2 + $0x54] sm:$0xf]
    %v945 = vld [vmem:[#allocation2 + $0x58] sm:$0xf]
    %v946 = vld [vmem:[#allocation2 + $0x5c] sm:$0xf]
    %v947 = vld [vmem:[#allocation2 + $0x60] sm:$0xf]
    %v948 = vld [vmem:[#allocation2 + $0x64] sm:$0xf]
    %v949 = vld [vmem:[#allocation2 + $0x68] sm:$0xf]
    %v950 = vld [vmem:[#allocation2 + $0x6c] sm:$0xf]
    %v951 = vld [vmem:[#allocation2 + $0x70] sm:$0xf]
    %v952 = vld [vmem:[#allocation2 + $0x74] sm:$0xf]
    %v953 = vld [vmem:[#allocation2 + $0x78] sm:$0xf]
    %v954 = vld [vmem:[#allocation2 + $0x7c] sm:$0xf]
    %v955 = vld [vmem:[#allocation2 + $0x80] sm:$0xf]
    %v956 = vld [vmem:[#allocation2 + $0x84] sm:$0xf]
    %v957 = vld [vmem:[#allocation2 + $0x88] sm:$0xf]
    %v958 = vld [vmem:[#allocation2 + $0x8c] sm:$0xf]
    %v959 = vld [vmem:[#allocation2 + $0x90] sm:$0xf]
    %v960 = vld [vmem:[#allocation2 + $0x94] sm:$0xf]
    %v961 = vld [vmem:[#allocation2 + $0x98] sm:$0xf]
    %v962 = vld [vmem:[#allocation2 + $0x9c] sm:$0xf]
    %v963 = vld [vmem:[#allocation2 + $0xa0] sm:$0xf]
    %v964 = vld [vmem:[#allocation2 + $0xa4] sm:$0xf]
    %v965 = vld [vmem:[#allocation2 + $0xa8] sm:$0xf]
    %v966 = vld [vmem:[#allocation2 + $0xac] sm:$0xf]
    %v967 = vld [vmem:[#allocation2 + $0xb0] sm:$0xf]
    %v968 = vld [vmem:[#allocation2 + $0xb4] sm:$0xf]
    %v969 = vld [vmem:[#allocation2 + $0xb8] sm:$0xf]
    %v970 = vld [vmem:[#allocation2 + $0xbc] sm:$0xf]
    %v971 = vld [vmem:[#allocation2 + $0xc0] sm:$0xf]
    %v972 = vld [vmem:[#allocation2 + $0xc4] sm:$0xf]
    %v973 = vld [vmem:[#allocation2 + $0xc8] sm:$0xf]
    %v974 = vld [vmem:[#allocation2 + $0xcc] sm:$0xf]
    %v975 = vld [vmem:[#allocation2 + $0xd0] sm:$0xf]
    %v976 = vld [vmem:[#allocation2 + $0xd4] sm:$0xf]
    %v977 = vld [vmem:[#allocation2 + $0xd8] sm:$0xf]
    %v978 = vld [vmem:[#allocation2 + $0xdc] sm:$0xf]
    %v979 = vld [vmem:[#allocation2 + $0xe0] sm:$0xf]
    %v980 = vld [vmem:[#allocation2 + $0xe4] sm:$0xf]
    %v981 = vld [vmem:[#allocation2 + $0xe8] sm:$0xf]
    %v982 = vld [vmem:[#allocation2 + $0xec] sm:$0xf]
    %v983 = vld [vmem:[#allocation2 + $0xf0] sm:$0xf]
    %v984 = vld [vmem:[#allocation2 + $0xf4] sm:$0xf]
    %v985 = vld [vmem:[#allocation2 + $0xf8] sm:$0xf]
    %v986 = vld [vmem:[#allocation2 + $0xfc] sm:$0xf]
    %v1051 = vunpack.c.l.b16 %v923
    %v1052 = vunpack.c.l.b16 %v924
    %v1053 = vunpack.c.l.b16 %v925
    %v1054 = vunpack.c.l.b16 %v926
    %v1055 = vunpack.c.l.b16 %v927
    %v1056 = vunpack.c.l.b16 %v928
    %v1057 = vunpack.c.l.b16 %v929
    %v1058 = vunpack.c.l.b16 %v930
    %v1059 = vunpack.c.l.b16 %v931
    %v1060 = vunpack.c.l.b16 %v932
    %v1061 = vunpack.c.l.b16 %v933
    %v1062 = vunpack.c.l.b16 %v934
    %v1063 = vunpack.c.l.b16 %v935
    %v1064 = vunpack.c.l.b16 %v936
    %v1065 = vunpack.c.l.b16 %v937
    %v1066 = vunpack.c.l.b16 %v938
    %v1067 = vunpack.c.l.b16 %v939
    %v1068 = vunpack.c.l.b16 %v940
    %v1069 = vunpack.c.l.b16 %v941
    %v1070 = vunpack.c.l.b16 %v942
    %v1071 = vunpack.c.l.b16 %v943
    %v1072 = vunpack.c.l.b16 %v944
    %v1073 = vunpack.c.l.b16 %v945
    %v1074 = vunpack.c.l.b16 %v946
    %v1075 = vunpack.c.l.b16 %v947
    %v1076 = vunpack.c.l.b16 %v948
    %v1077 = vunpack.c.l.b16 %v949
    %v1078 = vunpack.c.l.b16 %v950
    %v1079 = vunpack.c.l.b16 %v951
    %v1080 = vunpack.c.l.b16 %v952
    %v1081 = vunpack.c.l.b16 %v953
    %v1082 = vunpack.c.l.b16 %v954
    %v1083 = vunpack.c.l.b16 %v955
    %v1084 = vunpack.c.l.b16 %v956
    %v1085 = vunpack.c.l.b16 %v957
    %v1086 = vunpack.c.l.b16 %v958
    %v1087 = vunpack.c.l.b16 %v959
    %v1088 = vunpack.c.l.b16 %v960
    %v1089 = vunpack.c.l.b16 %v961
    %v1090 = vunpack.c.l.b16 %v962
    %v1091 = vunpack.c.l.b16 %v963
    %v1092 = vunpack.c.l.b16 %v964
    %v1093 = vunpack.c.l.b16 %v965
    %v1094 = vunpack.c.l.b16 %v966
    %v1095 = vunpack.c.l.b16 %v967
    %v1096 = vunpack.c.l.b16 %v968
    %v1097 = vunpack.c.l.b16 %v969
    %v1098 = vunpack.c.l.b16 %v970
    %v1099 = vunpack.c.l.b16 %v971
    %v1100 = vunpack.c.l.b16 %v972
    %v1101 = vunpack.c.l.b16 %v973
    %v1102 = vunpack.c.l.b16 %v974
    %v1103 = vunpack.c.l.b16 %v975
    %v1104 = vunpack.c.l.b16 %v976
    %v1105 = vunpack.c.l.b16 %v977
    %v1106 = vunpack.c.l.b16 %v978
    %v1107 = vunpack.c.l.b16 %v979
    %v1108 = vunpack.c.l.b16 %v980
    %v1109 = vunpack.c.l.b16 %v981
    %v1110 = vunpack.c.l.b16 %v982
    %v1111 = vunpack.c.l.b16 %v983
    %v1112 = vunpack.c.l.b16 %v984
    %v1113 = vunpack.c.l.b16 %v985
    %v1114 = vunpack.c.l.b16 %v986
    %v1115 = vpack.c.b16 %v1052, %v1051
    %v1116 = vpack.c.b16 %v1054, %v1053
    %v1117 = vpack.c.b16 %v1056, %v1055
    %v1118 = vpack.c.b16 %v1058, %v1057
    %v1119 = vpack.c.b16 %v1060, %v1059
    %v1120 = vpack.c.b16 %v1062, %v1061
    %v1121 = vpack.c.b16 %v1064, %v1063
    %v1122 = vpack.c.b16 %v1066, %v1065
    %v1123 = vpack.c.b16 %v1068, %v1067
    %v1124 = vpack.c.b16 %v1070, %v1069
    %v1125 = vpack.c.b16 %v1072, %v1071
    %v1126 = vpack.c.b16 %v1074, %v1073
    %v1127 = vpack.c.b16 %v1076, %v1075
    %v1128 = vpack.c.b16 %v1078, %v1077
    %v1129 = vpack.c.b16 %v1080, %v1079
    %v1130 = vpack.c.b16 %v1082, %v1081
    %v1131 = vpack.c.b16 %v1084, %v1083
    %v1132 = vpack.c.b16 %v1086, %v1085
    %v1133 = vpack.c.b16 %v1088, %v1087
    %v1134 = vpack.c.b16 %v1090, %v1089
    %v1135 = vpack.c.b16 %v1092, %v1091
    %v1136 = vpack.c.b16 %v1094, %v1093
    %v1137 = vpack.c.b16 %v1096, %v1095
    %v1138 = vpack.c.b16 %v1098, %v1097
    %v1139 = vpack.c.b16 %v1100, %v1099
    %v1140 = vpack.c.b16 %v1102, %v1101
    %v1141 = vpack.c.b16 %v1104, %v1103
    %v1142 = vpack.c.b16 %v1106, %v1105
    %v1143 = vpack.c.b16 %v1108, %v1107
    %v1144 = vpack.c.b16 %v1110, %v1109
    %v1145 = vpack.c.b16 %v1112, %v1111
    %v1146 = vpack.c.b16 %v1114, %v1113
    %1179 = vmatprep.subr.bf16.mxu0 0
    %1180 = vmatpush1.bf16.msra.mxu0 %v1115
    %1181 = vmatprep.subr.bf16.mxu0 0
    %1182 = vmatpush1.bf16.msra.mxu0 %v1116
    %1183 = vmatprep.subr.bf16.mxu0 0
    %1184 = vmatpush1.bf16.msra.mxu0 %v1117
    %1185 = vmatprep.subr.bf16.mxu0 0
    %1186 = vmatpush1.bf16.msra.mxu0 %v1118
    %1187 = vmatprep.subr.bf16.mxu0 0
    %1188 = vmatpush1.bf16.msra.mxu0 %v1119
    %1189 = vmatprep.subr.bf16.mxu0 0
    %1190 = vmatpush1.bf16.msra.mxu0 %v1120
    %1191 = vmatprep.subr.bf16.mxu0 0
    %1192 = vmatpush1.bf16.msra.mxu0 %v1121
    %1193 = vmatprep.subr.bf16.mxu0 0
    %1194 = vmatpush1.bf16.msra.mxu0 %v1122
    %1195 = vmatprep.subr.bf16.mxu0 0
    %1196 = vmatpush1.bf16.msra.mxu0 %v1123
    %1197 = vmatprep.subr.bf16.mxu0 0
    %1198 = vmatpush1.bf16.msra.mxu0 %v1124
    %1199 = vmatprep.subr.bf16.mxu0 0
    %1200 = vmatpush1.bf16.msra.mxu0 %v1125
    %1201 = vmatprep.subr.bf16.mxu0 0
    %1202 = vmatpush1.bf16.msra.mxu0 %v1126
    %1203 = vmatprep.subr.bf16.mxu0 0
    %1204 = vmatpush1.bf16.msra.mxu0 %v1127
    %1205 = vmatprep.subr.bf16.mxu0 0
    %1206 = vmatpush1.bf16.msra.mxu0 %v1128
    %1207 = vmatprep.subr.bf16.mxu0 0
    %1208 = vmatpush1.bf16.msra.mxu0 %v1129
    %1209 = vmatprep.subr.bf16.mxu0 0
    %1210 = vmatpush1.bf16.msra.mxu0 %v1130
    %1211 = vmatprep.mubr.bf16.mxu0 %v916
    %1212 = vmatmul.mubr.bf16.gmra.mrb[0].mxu0 %v915
    %v1213 = vpop.f32.mrb[0].mxu0
    %v1214 = vadd.f32 0.0, %v1213
    %v1215 = vpop.f32.mrb[0].mxu0
    %v1216 = vpop.f32.mrb[0].mxu0
    %v1217 = vadd.f32 0.0, %v1216
    %v1218 = vpop.f32.mrb[0].mxu0
    %1219 = vmatprep.mubr.bf16.mxu0 %v920
    %1220 = vmatmul.mubr.bf16.gmra.mrb[0].mxu0 %v919
    %v1221 = vpop.f32.mrb[0].mxu0
    %v1222 = vadd.f32 0.0, %v1221
    %v1223 = vpop.f32.mrb[0].mxu0
    %v1224 = vpop.f32.mrb[0].mxu0
    %v1225 = vadd.f32 0.0, %v1224
    %v1226 = vpop.f32.mrb[0].mxu0
    %1227 = vdwg.mxu0
    %1228 = vmatprep.subr.bf16.mxu0 0
    %1229 = vmatpush1.bf16.msra.mxu0 %v1131
    %1230 = vmatprep.subr.bf16.mxu0 0
    %1231 = vmatpush1.bf16.msra.mxu0 %v1132
    %1232 = vmatprep.subr.bf16.mxu0 0
    %1233 = vmatpush1.bf16.msra.mxu0 %v1133
    %1234 = vmatprep.subr.bf16.mxu0 0
    %1235 = vmatpush1.bf16.msra.mxu0 %v1134
    %1236 = vmatprep.subr.bf16.mxu0 0
    %1237 = vmatpush1.bf16.msra.mxu0 %v1135
    %1238 = vmatprep.subr.bf16.mxu0 0
    %1239 = vmatpush1.bf16.msra.mxu0 %v1136
    %1240 = vmatprep.subr.bf16.mxu0 0
    %1241 = vmatpush1.bf16.msra.mxu0 %v1137
    %1242 = vmatprep.subr.bf16.mxu0 0
    %1243 = vmatpush1.bf16.msra.mxu0 %v1138
    %1244 = vmatprep.subr.bf16.mxu0 0
    %1245 = vmatpush1.bf16.msra.mxu0 %v1139
    %1246 = vmatprep.subr.bf16.mxu0 0
    %1247 = vmatpush1.bf16.msra.mxu0 %v1140
    %1248 = vmatprep.subr.bf16.mxu0 0
    %1249 = vmatpush1.bf16.msra.mxu0 %v1141
    %1250 = vmatprep.subr.bf16.mxu0 0
    %1251 = vmatpush1.bf16.msra.mxu0 %v1142
    %1252 = vmatprep.subr.bf16.mxu0 0
    %1253 = vmatpush1.bf16.msra.mxu0 %v1143
    %1254 = vmatprep.subr.bf16.mxu0 0
    %1255 = vmatpush1.bf16.msra.mxu0 %v1144
    %1256 = vmatprep.subr.bf16.mxu0 0
    %1257 = vmatpush1.bf16.msra.mxu0 %v1145
    %1258 = vmatprep.subr.bf16.mxu0 0
    %1259 = vmatpush1.bf16.msra.mxu0 %v1146
    %1260 = vmatprep.mubr.bf16.mxu0 %v918
    %1261 = vmatmul.mubr.bf16.gmra.mrb[0].mxu0 %v917
    %v1262 = vpop.f32.mrb[0].mxu0
    %v1263 = vadd.f32 %v1214, %v1262
    %v1264 = vpop.f32.mrb[0].mxu0
    %v1265 = vpop.f32.mrb[0].mxu0
    %v1266 = vadd.f32 %v1217, %v1265
    %v1267 = vpop.f32.mrb[0].mxu0
    %1268 = vmatprep.mubr.bf16.mxu0 %v922
    %1269 = vmatmul.mubr.bf16.gmra.mrb[0].mxu0 %v921
    %v1270 = vpop.f32.mrb[0].mxu0
    %v1271 = vadd.f32 %v1222, %v1270
    %v1272 = vpop.f32.mrb[0].mxu0
    %v1273 = vpop.f32.mrb[0].mxu0
    %v1274 = vadd.f32 %v1225, %v1273
    %v1275 = vpop.f32.mrb[0].mxu0
    %1276 = vdwg.mxu0
    %v1277 = vadd.f32 %v1263, %v1266
    %v1278 = vrot.slane %v1277, 4
    %v1279 = vadd.f32 %v1277, %v1278
    %v1280 = vrot.slane %v1279, 2
    %v1281 = vadd.f32 %v1279, %v1280
    %v1282 = vrot.slane %v1281, 1
    %v1283 = vadd.f32 %v1281, %v1282
    %v1284 = vadd.f32 %v1271, %v1274
    %v1285 = vrot.slane %v1284, 4
    %v1286 = vadd.f32 %v1284, %v1285
    %v1287 = vrot.slane %v1286, 2
    %v1288 = vadd.f32 %v1286, %v1287
    %v1289 = vrot.slane %v1288, 1
    %v1290 = vadd.f32 %v1288, %v1289
    %v1291 = vld [vmem:[%s4] sm:$0x1]
    %v1293 = vlaneseq
    %v1294 = vshrl.u32 %v1293, 7
    %v1295 = vsub.s32 0, %v1294
    %v1296 = vrot.slane %v1291, %v1295
    %v1298 = vadd.f32 %v1283, %v1296
    %v1299 = vadd.f32 %v1290, %v1296
    %v1300 = vmul.f32 %v1298, %v1298
    %v1301 = vmul.f32 %v1299, %v1299
    %v1304 = vrot.slane %v1301, 7
    %vm1305 = vcmask 1041409
    %v1306 = vsel %vm1305, %v1304, %v1300
    %vm1308 = vcmask 1041408
    %v1309 = vsel %vm1308, %v1306, 0.0
    %1310 = vadd.xlane.f32.xlu0 %v1309
    %v1311 = vpop.xlane.xlu0 %1310
    %v1312 = vadd.f32 %v1311, 1e-12
    %v1313 = vrsqrt.pop %v1312
    %v1315 = vrot.slane %v1313, 1
    %v1318 = vmul.f32 %v1298, %v1313
    %v1319 = vmul.f32 %v1299, %v1315
    %v1320 = vpack.c.bf16 %v1318, %v1318
    %v1321 = vpack.c.bf16 %v1319, %v1319
    %v1322 = vld [vmem:[%s5] sm:$0xf]
    %v1323 = vld [vmem:[%s5 + $0x4] sm:$0xf]
    %v1324 = vld [vmem:[%s5 + $0x8] sm:$0xf]
    %v1325 = vld [vmem:[%s5 + $0xc] sm:$0xf]
    %v1326 = vld [vmem:[%s5 + $0x10] sm:$0xf]
    %v1327 = vld [vmem:[%s5 + $0x14] sm:$0xf]
    %v1328 = vld [vmem:[%s5 + $0x18] sm:$0xf]
    %v1329 = vld [vmem:[%s5 + $0x1c] sm:$0xf]
    %v1330 = vld [vmem:[%s5 + $0x20] sm:$0xf]
    %v1331 = vld [vmem:[%s5 + $0x24] sm:$0xf]
    %v1332 = vld [vmem:[%s5 + $0x28] sm:$0xf]
    %v1333 = vld [vmem:[%s5 + $0x2c] sm:$0xf]
    %v1334 = vld [vmem:[%s5 + $0x30] sm:$0xf]
    %v1335 = vld [vmem:[%s5 + $0x34] sm:$0xf]
    %v1336 = vld [vmem:[%s5 + $0x38] sm:$0xf]
    %v1337 = vld [vmem:[%s5 + $0x3c] sm:$0xf]
    %v1340 = vunpack.c.l.b16 %v1320
    %v1341 = vunpack.c.l.b16 %v1321
    %v1342 = vrot.slane %v1341, 7
    %v1343 = vsel %vm1305, %v1342, %v1340
    %v1344 = vpack.c.b16 %v1343, %v1343
    %v1362 = vunpack.c.l.b16 %v1322
    %v1363 = vunpack.c.l.b16 %v1323
    %v1364 = vunpack.c.l.b16 %v1324
    %v1365 = vunpack.c.l.b16 %v1325
    %v1366 = vunpack.c.l.b16 %v1326
    %v1367 = vunpack.c.l.b16 %v1327
    %v1368 = vunpack.c.l.b16 %v1328
    %v1369 = vunpack.c.l.b16 %v1329
    %v1370 = vunpack.c.l.b16 %v1330
    %v1371 = vunpack.c.l.b16 %v1331
    %v1372 = vunpack.c.l.b16 %v1332
    %v1373 = vunpack.c.l.b16 %v1333
    %v1374 = vunpack.c.l.b16 %v1334
    %v1375 = vunpack.c.l.b16 %v1335
    %v1376 = vunpack.c.l.b16 %v1336
    %v1377 = vunpack.c.l.b16 %v1337
    %v1378 = vpack.c.b16 %v1363, %v1362
    %v1379 = vpack.c.b16 %v1365, %v1364
    %v1380 = vpack.c.b16 %v1367, %v1366
    %v1381 = vpack.c.b16 %v1369, %v1368
    %v1382 = vpack.c.b16 %v1371, %v1370
    %v1383 = vpack.c.b16 %v1373, %v1372
    %v1384 = vpack.c.b16 %v1375, %v1374
    %v1385 = vpack.c.b16 %v1377, %v1376
    %1394 = vmatprep.subr.bf16.mxu0 0
    %1395 = vmatpush1.bf16.msra.mxu0 %v1378
    %1396 = vmatprep.subr.bf16.mxu0 0
    %1397 = vmatpush1.bf16.msra.mxu0 %v1379
    %1398 = vmatprep.subr.bf16.mxu0 0
    %1399 = vmatpush1.bf16.msra.mxu0 %v1380
    %1400 = vmatprep.subr.bf16.mxu0 0
    %1401 = vmatpush1.bf16.msra.mxu0 %v1381
    %1402 = vmatprep.subr.bf16.mxu0 0
    %1403 = vmatpush1.bf16.msra.mxu0 %v1382
    %1404 = vmatprep.subr.bf16.mxu0 0
    %1405 = vmatpush1.bf16.msra.mxu0 %v1383
    %1406 = vmatprep.subr.bf16.mxu0 0
    %1407 = vmatpush1.bf16.msra.mxu0 %v1384
    %1408 = vmatprep.subr.bf16.mxu0 0
    %1409 = vmatpush1.bf16.msra.mxu0 %v1385
    %1410 = vmatprep.subr.bf16.mxu0 0
    %1411 = vmatpush1.bf16.msra.mxu0 0
    %1412 = vmatprep.subr.bf16.mxu0 0
    %1413 = vmatpush1.bf16.msra.mxu0 0
    %1414 = vmatprep.subr.bf16.mxu0 0
    %1415 = vmatpush1.bf16.msra.mxu0 0
    %1416 = vmatprep.subr.bf16.mxu0 0
    %1417 = vmatpush1.bf16.msra.mxu0 0
    %1418 = vmatprep.subr.bf16.mxu0 0
    %1419 = vmatpush1.bf16.msra.mxu0 0
    %1420 = vmatprep.subr.bf16.mxu0 0
    %1421 = vmatpush1.bf16.msra.mxu0 0
    %1422 = vmatprep.subr.bf16.mxu0 0
    %1423 = vmatpush1.bf16.msra.mxu0 0
    %1424 = vmatprep.subr.bf16.mxu0 0
    %1425 = vmatpush1.bf16.msra.mxu0 0
    %1426 = vmatprep.mubr.bf16.mxu0 0
    %1427 = vmatmul.mubr.bf16.gmra.mrb[0].mxu0 %v1344
    %v1428 = vpop.f32.mrb[0].mxu0
    %v1429 = vadd.f32 0.0, %v1428
    %v1430 = vpop.f32.mrb[0].mxu0
    %v1431 = vpop.f32.mrb[0].mxu0
    %v1432 = vpop.f32.mrb[0].mxu0
    %1433 = vdwg.mxu0
    %v1434 = vmul.f32 %v1429, %v1429
    %v1435 = vsel %vm1308, %v1434, 0.0
    %1436 = vadd.xlane.f32.xlu0 %v1435
    %v1437 = vpop.xlane.xlu0 %1436
    %v1438 = vadd.f32 %v1437, 1e-12
    %v1439 = vrsqrt.pop %v1438
    %v1440 = vmul.f32 %v1429, %v1439
    %1441 = vst [vmem:[#allocation5] sm:$0x3] %v1440
    // Predicated region
    $region30: #{vision_model_forward.1} parent=1 // pred_check
      _
    $region31: #{vision_model_forward.1} parent=1 // pred_check_branch
      %1443 = sbr.rel (0) target = $region33
    $region32: #{vision_model_forward.1} parent=1 // pred_region
      %s1445 = ssub.s32 32, 32
      %1446 = vsyncadd [#allocation4], %s1445
      %s1448 = sshll.u32 [#allocation5], 4
      %s1449 = int_to_ptr.vmem [resolvable:$true] %s1448
      %1451 = dma.vmem_to_hbm [thread:$0]  %s1449, 32, %s6, [#allocation4]
    $region33: #{vision_model_forward.1} parent=1 // pred_fallthru
      _
    // Predicated region
    $region34: #{vision_model_forward.1} parent=1 // pred_check
      _
    $region35: #{vision_model_forward.1} parent=1 // pred_check_branch
      %1453 = sbr.rel (0) target = $region37
    $region36: #{vision_model_forward.1} parent=1 // pred_region
      %1454 = dma.done [#allocation4], 32
    $region37: #{vision_model_forward.1} parent=1 // pred_fallthru
      _
    %1455 = vsyncpa [#allocation3], 1
    %1456 = vsyncpa [#allocation4], 1

</llo_original>
